<compile_context>
chip_gen: v6e
topology: v6e:2x2x1
jax: 0.10.0
libtpu: 0.0.40
codegen_flags: <defaults>
</compile_context>

<pallas_src>
import functools

import jax
import jax.numpy as jnp
from jax.experimental import pallas as pl
from jax.experimental.pallas import tpu as pltpu


def _round_up(x, m):
    return (x + m - 1) // m * m


def _num_tensorcores():
    """2 TensorCores per chip on v7x; 1 on v5e/v6e. Falls back to 1."""
    try:
        kind = jax.devices()[0].device_kind.lower()
    except Exception:
        return 1
    return 2 if "v7" in kind else 1


def qnetwork_kernel(x_ref, p_ref, q_ref, act_ref, *, S, Hp, A, off_w2, off_w3, off_b):
    """One batch tile: 3x (MXU matmul + VPU bias-add/ReLU) + fused greedy argmax.

    All parameter slices are lane-dense (Hp = 128 lanes); padded lanes are zero so the
    math is identical to the logical (H, A)-sized network.
    """
    x = x_ref[...]                                   # (TB, S) f32

    # Static slices into the packed parameter buffer (all offsets 8-row aligned).
    w1 = p_ref[0:S, :]                               # (S, Hp)
    w2 = p_ref[off_w2:off_w2 + Hp, :]                # (Hp, Hp)
    w3 = p_ref[off_w3:off_w3 + Hp, :]                # (Hp, Hp)  (cols >= A are zero)
    b1 = p_ref[off_b:off_b + 1, :]                   # (1, Hp)
    b2 = p_ref[off_b + 1:off_b + 2, :]               # (1, Hp)
    b3 = p_ref[off_b + 2:off_b + 3, :]               # (1, Hp)   (lanes >= A are zero)

    # Layer 1: Linear + ReLU
    h1 = jnp.maximum(jnp.dot(x, w1, preferred_element_type=jnp.float32) + b1, 0.0)
    # Layer 2: Linear + ReLU
    h2 = jnp.maximum(jnp.dot(h1, w2, preferred_element_type=jnp.float32) + b2, 0.0)
    # Layer 3: Linear (Q-values, no activation). Lane-dense full-128 store; cols >= A are 0.
    q = jnp.dot(h2, w3, preferred_element_type=jnp.float32) + b3
    q_ref[...] = q.astype(q_ref.dtype)

    # Fused greedy action: argmax over the first A (real) columns, implemented with
    # max + first-index-of-max reductions (cheap XLU work, no extra kernel launch).
    col = jax.lax.broadcasted_iota(jnp.int32, q.shape, 1)            # (TB, Hp)
    q_valid = jnp.where(col < A, q, -jnp.inf)
    row_max = jnp.max(q_valid, axis=-1, keepdims=True)
    idx = jnp.where(q_valid == row_max, col, jnp.int32(Hp))
    act = jnp.min(idx, axis=-1, keepdims=True)                       # (TB, 1) int32
    act_ref[...] = jnp.broadcast_to(act, act_ref.shape)              # lane-dense int32 store


def pack_params(params, lane_width=128):
    """Concatenate w1,w2,w3,b1,b2,b3 into one f32 (rows, 128) buffer.

    Hidden and action dims are zero-padded to `lane_width` lanes so all vregs / MXU tiles
    are full and the output store is lane-dense. Zero padding does not change the math
    (ReLU(0) == 0; zero weight rows/cols contribute nothing).
    """
    w1, b1, w2, b2, w3, b3 = (params["w1"], params["b1"], params["w2"],
                              params["b2"], params["w3"], params["b3"])
    S, H = w1.shape
    A = w3.shape[1]
    Hp = _round_up(max(H, A), lane_width)
    assert A <= Hp, "action_size must fit in the padded lane width"

    off_w2 = _round_up(S, 8)
    off_w3 = off_w2 + Hp          # Hp is a multiple of 8
    off_b = off_w3 + Hp
    rows = _round_up(off_b + 3, 8)

    P = jnp.zeros((rows, Hp), jnp.float32)
    P = P.at[0:S, 0:H].set(w1.astype(jnp.float32))
    P = P.at[off_w2:off_w2 + H, 0:H].set(w2.astype(jnp.float32))
    P = P.at[off_w3:off_w3 + H, 0:A].set(w3.astype(jnp.float32))
    P = P.at[off_b, 0:H].set(b1.reshape(-1).astype(jnp.float32))
    P = P.at[off_b + 1, 0:H].set(b2.reshape(-1).astype(jnp.float32))
    P = P.at[off_b + 2, 0:A].set(b3.reshape(-1).astype(jnp.float32))
    meta = dict(S=S, H=H, A=A, Hp=Hp, off_w2=off_w2, off_w3=off_w3, off_b=off_b)
    return P, meta


def qnetwork_forward(state, packed, meta, *, tb=4096):
    """state: (B, state_size) f32. packed/meta from pack_params.

    Returns (q_values (B, action_size) f32, greedy_action (B,) int32).
    """
    B, S = state.shape
    Hp, A = meta["Hp"], meta["A"]
    assert S == meta["S"]

    # Batch tile: one grid step per TensorCore (grid is a serial loop on 1-TC v5e/v6e;
    # 2-way "parallel" split feeds both v7x cores), capped at `tb` rows, multiple of 8.
    ncores = _num_tensorcores()
    Bp8 = _round_up(B, 8)
    TB = min(tb, _round_up(pl.cdiv(Bp8, ncores), 8))
    Bp = _round_up(B, TB)
    if Bp != B:
        state = jnp.pad(state, ((0, Bp - B), (0, 0)))
    grid = (Bp // TB,)

    kernel = functools.partial(
        qnetwork_kernel, S=meta["S"], Hp=Hp, A=A,
        off_w2=meta["off_w2"], off_w3=meta["off_w3"], off_b=meta["off_b"])

    flops = 2 * Bp * (S * Hp + Hp * Hp + Hp * Hp)
    bytes_accessed = int(state.size * 4 + packed.size * 4 + 2 * Bp * Hp * 4)

    q_full, act_full = pl.pallas_call(
        kernel,
        out_shape=(jax.ShapeDtypeStruct((Bp, Hp), jnp.float32),
                   jax.ShapeDtypeStruct((Bp, Hp), jnp.int32)),
        grid=grid,
        in_specs=[
            # Activations: streamed per batch tile (auto double-buffered).
            pl.BlockSpec((TB, S), lambda i: (i, 0)),
            # Packed params: same block for every i -> fetched once, VMEM-resident.
            pl.BlockSpec(packed.shape, lambda i: (0, 0)),
        ],
        out_specs=[
            pl.BlockSpec((TB, Hp), lambda i: (i, 0)),   # lane-dense Q store
            pl.BlockSpec((TB, Hp), lambda i: (i, 0)),   # lane-dense action store
        ],
        compiler_params=pltpu.CompilerParams(dimension_semantics=("parallel",)),
        cost_estimate=pl.CostEstimate(flops=flops, transcendentals=0,
                                      bytes_accessed=bytes_accessed),
    )(state, packed)

    # Padded batch rows / padded lanes are garbage or zero; slice them off here.
    return q_full[:B, :A], act_full[:B, 0]


def init_params(key, state_size, action_size, hidden_size=64):
    """Deterministic init mimicking nn.Linear's uniform(-1/sqrt(fan_in), 1/sqrt(fan_in))."""
    ks = jax.random.split(key, 6)

    def lin(kw, kb, fan_in, fan_out):
        bound = 1.0 / jnp.sqrt(jnp.float32(fan_in))
        w = jax.random.uniform(kw, (fan_in, fan_out), jnp.float32, -bound, bound)
        b = jax.random.uniform(kb, (1, fan_out), jnp.float32, -bound, bound)
        return w, b

    w1, b1 = lin(ks[0], ks[1], state_size, hidden_size)
    w2, b2 = lin(ks[2], ks[3], hidden_size, hidden_size)
    w3, b3 = lin(ks[4], ks[5], hidden_size, action_size)
    return {"w1": w1, "b1": b1, "w2": w2, "b2": b2, "w3": w3, "b3": b3}


def qnetwork_ref(state, p):
    h1 = jnp.maximum(state @ p["w1"] + p["b1"], 0.0)
    h2 = jnp.maximum(h1 @ p["w2"] + p["b2"], 0.0)
    return h2 @ p["w3"] + p["b3"]


if __name__ == "__main__":
    key = jax.random.PRNGKey(0)
    k_x, k_p, k_x2 = jax.random.split(key, 3)

    batch, state_size, action_size, hidden_size = 8, 16, 4, 64
    state = jax.random.normal(k_x, (batch, state_size), jnp.float32)
    params = init_params(k_p, state_size, action_size, hidden_size)
    packed, meta = pack_params(params)

    # 1) Small batch (grid=1) -- exact vs reference; fused argmax consistent with Q.
    q_ref_small = qnetwork_ref(state, params)
    q, act = qnetwork_forward(state, packed, meta)
    jax.block_until_ready((q, act))
    assert q.shape == (batch, action_size)
    assert act.shape == (batch,)
    assert jnp.allclose(q, q_ref_small, atol=1e-5, rtol=1e-5)
    assert jnp.array_equal(act, jnp.argmax(q, axis=-1).astype(jnp.int32))

    # 2) Training-sized, non-8-multiple batch -> exercises batch padding and (on v7x)
    #    the 2-way parallel batch split.
    big_b = 1003
    big_state = jax.random.normal(k_x2, (big_b, state_size), jnp.float32)
    q_big, act_big = qnetwork_forward(big_state, packed, meta)
    jax.block_until_ready((q_big, act_big))
    assert q_big.shape == (big_b, action_size)
    assert act_big.shape == (big_b,)
    assert jnp.allclose(q_big, qnetwork_ref(big_state, params), atol=1e-4, rtol=1e-4)
    assert jnp.array_equal(act_big, jnp.argmax(q_big, axis=-1).astype(jnp.int32))

    print("KERNEL_OK")
</pallas_src>

<mosaic_0001>
module attributes {stable_mosaic.version = 11 : i64} {
  func.func @qnetwork_kernel(%arg0: i32, %arg1: memref<8x16xf32, #tpu.memory_space<vmem>>, %arg2: memref<280x128xf32, #tpu.memory_space<vmem>>, %arg3: memref<8x128xf32, #tpu.memory_space<vmem>>, %arg4: memref<8x128xi32, #tpu.memory_space<vmem>>) attributes {dimension_semantics = [#tpu.dimension_semantics<parallel>], iteration_bounds = array<i64: 1>, scalar_prefetch = 0 : i64, scratch_operands = 0 : i64, tpu.core_type = #tpu.core_type<tc>, window_params = [{transform_indices = @transform_0, window_bounds = array<i64: 8, 16>}, {pipeline_mode = #tpu.pipeline_mode<synchronous>, transform_indices = @transform_1, window_bounds = array<i64: 280, 128>}, {transform_indices = @transform_2, window_bounds = array<i64: 8, 128>}, {transform_indices = @transform_3, window_bounds = array<i64: 8, 128>}]} {
    %c0 = arith.constant 0 : index
    %c0_0 = arith.constant 0 : index
    %0 = vector.load %arg1[%c0, %c0_0] : memref<8x16xf32, #tpu.memory_space<vmem>>, vector<8x16xf32>
    %c0_1 = arith.constant 0 : index
    %c0_2 = arith.constant 0 : index
    %1 = vector.load %arg2[%c0_1, %c0_2] : memref<280x128xf32, #tpu.memory_space<vmem>>, vector<16x128xf32>
    %c16 = arith.constant 16 : index
    %c0_3 = arith.constant 0 : index
    %2 = vector.load %arg2[%c16, %c0_3] : memref<280x128xf32, #tpu.memory_space<vmem>>, vector<128x128xf32>
    %c144 = arith.constant 144 : index
    %c0_4 = arith.constant 0 : index
    %3 = vector.load %arg2[%c144, %c0_4] : memref<280x128xf32, #tpu.memory_space<vmem>>, vector<128x128xf32>
    %c272 = arith.constant 272 : index
    %c0_5 = arith.constant 0 : index
    %4 = vector.load %arg2[%c272, %c0_5] : memref<280x128xf32, #tpu.memory_space<vmem>>, vector<1x128xf32>
    %c273 = arith.constant 273 : index
    %c0_6 = arith.constant 0 : index
    %5 = vector.load %arg2[%c273, %c0_6] : memref<280x128xf32, #tpu.memory_space<vmem>>, vector<1x128xf32>
    %c274 = arith.constant 274 : index
    %c0_7 = arith.constant 0 : index
    %6 = vector.load %arg2[%c274, %c0_7] : memref<280x128xf32, #tpu.memory_space<vmem>>, vector<1x128xf32>
    %cst = arith.constant dense<0.000000e+00> : vector<8x128xf32>
    %7 = tpu.matmul %0, %1, %cst {dimension_numbers = #tpu.dot_dimension_numbers<[1], [0], [0], [1], [0, 0, 1, 1], [], []>} : vector<8x16xf32>, vector<16x128xf32>, vector<8x128xf32> -> vector<8x128xf32>
    %8 = vector.broadcast %4 : vector<1x128xf32> to vector<8x128xf32>
    %9 = arith.addf %7, %8 : vector<8x128xf32>
    %cst_8 = arith.constant 0.000000e+00 : f32
    %10 = vector.broadcast %cst_8 : f32 to vector<8x128xf32>
    %11 = arith.maximumf %9, %10 : vector<8x128xf32>
    %cst_9 = arith.constant dense<0.000000e+00> : vector<8x128xf32>
    %12 = tpu.matmul %11, %2, %cst_9 {dimension_numbers = #tpu.dot_dimension_numbers<[1], [0], [0], [1], [0, 0, 1, 1], [], []>} : vector<8x128xf32>, vector<128x128xf32>, vector<8x128xf32> -> vector<8x128xf32>
    %13 = vector.broadcast %5 : vector<1x128xf32> to vector<8x128xf32>
    %14 = arith.addf %12, %13 : vector<8x128xf32>
    %cst_10 = arith.constant 0.000000e+00 : f32
    %15 = vector.broadcast %cst_10 : f32 to vector<8x128xf32>
    %16 = arith.maximumf %14, %15 : vector<8x128xf32>
    %cst_11 = arith.constant dense<0.000000e+00> : vector<8x128xf32>
    %17 = tpu.matmul %16, %3, %cst_11 {dimension_numbers = #tpu.dot_dimension_numbers<[1], [0], [0], [1], [0, 0, 1, 1], [], []>} : vector<8x128xf32>, vector<128x128xf32>, vector<8x128xf32> -> vector<8x128xf32>
    %18 = vector.broadcast %6 : vector<1x128xf32> to vector<8x128xf32>
    %19 = arith.addf %17, %18 : vector<8x128xf32>
    %c0_12 = arith.constant 0 : index
    %c0_13 = arith.constant 0 : index
    %20 = vector.load %arg3[%c0_12, %c0_13] : memref<8x128xf32, #tpu.memory_space<vmem>>, vector<8x128xf32>
    tpu.vector_store %arg3[%c0_12, %c0_13], %19 {strides = array<i32>} : memref<8x128xf32, #tpu.memory_space<vmem>>, vector<8x128xf32>,
    %21 = tpu.iota {dimensions = array<i32: 1>} : vector<8x128xi32>
    %c4_i32 = arith.constant 4 : i32
    %22 = vector.broadcast %c4_i32 : i32 to vector<8x128xi32>
    %23 = arith.cmpi slt, %21, %22 : vector<8x128xi32>
    %cst_14 = arith.constant 0xFF800000 : f32
    %24 = vector.broadcast %cst_14 : f32 to vector<8x128xf32>
    %25 = arith.select %23, %19, %24 : vector<8x128xi1>, vector<8x128xf32>
    %cst_15 = arith.constant dense<0xFF800000> : vector<8xf32>
    %26 = vector.multi_reduction <maximumf>, %25, %cst_15 [1] : vector<8x128xf32> to vector<8xf32>
    %27 = vector.shape_cast %26 : vector<8xf32> to vector<8x1xf32>
    %28 = vector.broadcast %27 : vector<8x1xf32> to vector<8x128xf32>
    %29 = arith.cmpf oeq, %25, %28 : vector<8x128xf32>
    %c128_i32 = arith.constant 128 : i32
    %30 = vector.broadcast %c128_i32 : i32 to vector<8x128xi32>
    %31 = arith.select %29, %21, %30 : vector<8x128xi1>, vector<8x128xi32>
    %cst_16 = arith.constant dense<2147483647> : vector<8xi32>
    %32 = vector.multi_reduction <minsi>, %31, %cst_16 [1] : vector<8x128xi32> to vector<8xi32>
    %33 = vector.shape_cast %32 : vector<8xi32> to vector<8x1xi32>
    %34 = vector.shape_cast %33 : vector<8x1xi32> to vector<8x1xi32>
    %35 = vector.broadcast %34 : vector<8x1xi32> to vector<8x128xi32>
    %c0_17 = arith.constant 0 : index
    %c0_18 = arith.constant 0 : index
    %36 = vector.load %arg4[%c0_17, %c0_18] : memref<8x128xi32, #tpu.memory_space<vmem>>, vector<8x128xi32>
    tpu.vector_store %arg4[%c0_17, %c0_18], %35 {strides = array<i32>} : memref<8x128xi32, #tpu.memory_space<vmem>>, vector<8x128xi32>,
    return
  }
  func.func @transform_0(%arg0: i32) -> (i32, i32) {
    %c0_i32 = arith.constant 0 : i32
    %c0_i32_0 = arith.constant 0 : i32
    return %arg0, %c0_i32 : i32, i32
  }
  func.func @transform_1(%arg0: i32) -> (i32, i32) {
    %c0_i32 = arith.constant 0 : i32
    %c0_i32_0 = arith.constant 0 : i32
    %c0_i32_1 = arith.constant 0 : i32
    return %c0_i32, %c0_i32_0 : i32, i32
  }
  func.func @transform_2(%arg0: i32) -> (i32, i32) {
    %c0_i32 = arith.constant 0 : i32
    %c0_i32_0 = arith.constant 0 : i32
    return %arg0, %c0_i32 : i32, i32
  }
  func.func @transform_3(%arg0: i32) -> (i32, i32) {
    %c0_i32 = arith.constant 0 : i32
    %c0_i32_0 = arith.constant 0 : i32
    return %arg0, %c0_i32 : i32, i32
  }
}

</mosaic_0001>

<llo_original>
// kernel: tpu_custom_call.1
$region0: #{tpu_custom_call.1}
  #allocation0 [shape = 'u32[]', space=smem, size = 0x4, offset = 0x4, fixed_abs, tag = 'smem constant byte address 0x4 - core index']
  #allocation1 [shape = 'u32[144,128]{1,0:T(1,128)}', space=vmem, size = 0x12000, scoped, tag = 'internal scratch']
  %s0 = inlined_call_operand.hbm [shape: f32[8,16], index: 0, kind: input, shape index: {}]
  %s1 = inlined_call_operand.hbm [shape: f32[280,128], index: 1, kind: input, shape index: {}]
  %s2 = inlined_call_operand.hbm [shape: f32[8,128], index: 2, kind: output, shape index: {0}]
  %s3 = inlined_call_operand.hbm [shape: s32[8,128], index: 3, kind: output, shape index: {1}]
  %4 = xla_tuple %s2, %s3
  %s5 = sld [smem:[#allocation0]]
  $region34: #{tpu_custom_call.1} parent=0
    _
  %s7 = ssub.s32 1, %s5
  %s8 = scalar_select 0, %s7, %s5
  $region1: #{tpu_custom_call.1} parent=0
    #allocation2 [shape = 'u8[4096]{0}', space=vmem, size = 0x1000, scoped, tag = 'input window, operand 0, single buffered']
    #allocation3 [shape = 's32[1]{0}', space=sflag, size = 0x4, scoped, tag = 'scoped memory for tpu_custom_call.1']
    #allocation4 [shape = 's32[1]{0}', space=sflag, size = 0x4, scoped, tag = 'scoped memory for tpu_custom_call.1']
    #allocation5 [shape = 'u8[143360]{0}', space=vmem, size = 0x23000, scoped, tag = 'input window, operand 1, single buffered']
    #allocation6 [shape = 's32[1]{0}', space=sflag, size = 0x4, scoped, tag = 'scoped memory for tpu_custom_call.1']
    #allocation7 [shape = 'u8[4096]{0}', space=vmem, size = 0x1000, scoped, tag = 'output window, operand 0, single buffered']
    #allocation8 [shape = 'u8[4096]{0}', space=vmem, size = 0x1000, scoped, tag = 'output window, operand 1, single buffered']
    #allocation9 [shape = 's32[1]{0}', space=sflag, size = 0x4, scoped, tag = 'scoped memory for tpu_custom_call.1']
    %9 = vsyncpa [#allocation3], 0
    %10 = vsyncpa [#allocation6], 0
    %11 = vsyncpa [#allocation4], 0
    %12 = vsyncpa [#allocation9], 0
    // Predicated region
    $region2: #{tpu_custom_call.1} parent=1 // pred_check
      _
    $region3: #{tpu_custom_call.1} parent=1 // pred_check_branch
      %14 = sbr.rel (0) target = $region5
    $region4: #{tpu_custom_call.1} parent=1 // pred_region
      %s16 = ssub.s32 128, 128
      %17 = vsyncadd [#allocation3], %s16
      %s19 = sshll.u32 [#allocation2], 4
      %s20 = int_to_ptr.vmem [resolvable:$true] %s19
      %22 = dma.hbm_to_vmem [thread:$0]  %s0, 128, %s20, [#allocation3]
    $region5: #{tpu_custom_call.1} parent=1 // pred_fallthru
      _
    // Predicated region
    $region6: #{tpu_custom_call.1} parent=1 // pred_check
      _
    $region7: #{tpu_custom_call.1} parent=1 // pred_check_branch
      %24 = sbr.rel (0) target = $region9
    $region8: #{tpu_custom_call.1} parent=1 // pred_region
      %s26 = ssub.s32 4480, 4480
      %27 = vsyncadd [#allocation6], %s26
      %s28 = sshll.u32 [#allocation5], 4
      %s29 = int_to_ptr.vmem [resolvable:$true] %s28
      %34 = dma.hbm_to_vmem [thread:$0]  %s1, 4480, %s29, [#allocation6], 128, 128, 8
    $region9: #{tpu_custom_call.1} parent=1 // pred_fallthru
      _
    // Predicated region
    $region10: #{tpu_custom_call.1} parent=1 // pred_check
      _
    $region11: #{tpu_custom_call.1} parent=1 // pred_check_branch
      %36 = sbr.rel (0) target = $region13
    $region12: #{tpu_custom_call.1} parent=1 // pred_region
      %37 = dma.done [#allocation3], 128
    $region13: #{tpu_custom_call.1} parent=1 // pred_fallthru
      _
    // Predicated region
    $region14: #{tpu_custom_call.1} parent=1 // pred_check
      _
    $region15: #{tpu_custom_call.1} parent=1 // pred_check_branch
      %39 = sbr.rel (0) target = $region17
    $region16: #{tpu_custom_call.1} parent=1 // pred_region
      %40 = dma.done [#allocation6], 4480
    $region17: #{tpu_custom_call.1} parent=1 // pred_fallthru
      _
    %v41 = vld [vmem:[#allocation2] sm:$0xff]
    %v42 = vld [vmem:[#allocation5] sm:$0xff]
    %v43 = vld [vmem:[#allocation5 + $0x8] sm:$0xff]
    %v44 = vld [vmem:[#allocation5 + $0x10] sm:$0xff]
    %v45 = vld [vmem:[#allocation5 + $0x18] sm:$0xff]
    %v46 = vld [vmem:[#allocation5 + $0x20] sm:$0xff]
    %v47 = vld [vmem:[#allocation5 + $0x28] sm:$0xff]
    %v48 = vld [vmem:[#allocation5 + $0x30] sm:$0xff]
    %v49 = vld [vmem:[#allocation5 + $0x38] sm:$0xff]
    %v50 = vld [vmem:[#allocation5 + $0x40] sm:$0xff]
    %v51 = vld [vmem:[#allocation5 + $0x48] sm:$0xff]
    %v52 = vld [vmem:[#allocation5 + $0x50] sm:$0xff]
    %v53 = vld [vmem:[#allocation5 + $0x58] sm:$0xff]
    %v54 = vld [vmem:[#allocation5 + $0x60] sm:$0xff]
    %v55 = vld [vmem:[#allocation5 + $0x68] sm:$0xff]
    %v56 = vld [vmem:[#allocation5 + $0x70] sm:$0xff]
    %v57 = vld [vmem:[#allocation5 + $0x78] sm:$0xff]
    %v58 = vld [vmem:[#allocation5 + $0x80] sm:$0xff]
    %v59 = vld [vmem:[#allocation5 + $0x88] sm:$0xff]
    %v60 = vld [vmem:[#allocation5 + $0x90] sm:$0xff]
    %v61 = vld [vmem:[#allocation5 + $0x98] sm:$0xff]
    %v62 = vld [vmem:[#allocation5 + $0xa0] sm:$0xff]
    %v63 = vld [vmem:[#allocation5 + $0xa8] sm:$0xff]
    %v64 = vld [vmem:[#allocation5 + $0xb0] sm:$0xff]
    %v65 = vld [vmem:[#allocation5 + $0xb8] sm:$0xff]
    %v66 = vld [vmem:[#allocation5 + $0xc0] sm:$0xff]
    %v67 = vld [vmem:[#allocation5 + $0xc8] sm:$0xff]
    %v68 = vld [vmem:[#allocation5 + $0xd0] sm:$0xff]
    %v69 = vld [vmem:[#allocation5 + $0xd8] sm:$0xff]
    %v70 = vld [vmem:[#allocation5 + $0xe0] sm:$0xff]
    %v71 = vld [vmem:[#allocation5 + $0xe8] sm:$0xff]
    %v72 = vld [vmem:[#allocation5 + $0xf0] sm:$0xff]
    %v73 = vld [vmem:[#allocation5 + $0xf8] sm:$0xff]
    %v74 = vld [vmem:[#allocation5 + $0x100] sm:$0xff]
    %v75 = vld [vmem:[#allocation5 + $0x108] sm:$0xff]
    %v76 = vld [vmem:[#allocation5 + $0x110] sm:$0x1]
    %v77 = vld [vmem:[#allocation5 + $0x111] sm:$0x1]
    %v78 = vld [vmem:[#allocation5 + $0x112] sm:$0x1]
    %v79 = vlaneseq
    %v80 = vshrl.u32 %v79, 7
    %v81 = vsub.s32 0, %v80
    %v82 = vrot.slane %v76, %v81
    %vm83 = vcmask 130048
    %v85 = vsel %vm83, %v41, 0
    %87 = vmatprep.subr.mxu0 0.0
    %88 = vmatpush1.msra.mxu0 0.0
    %89 = vmatprep.subr.mxu0 0.0
    %90 = vmatpush1.msra.mxu0 0.0
    %91 = vmatprep.subr.mxu0 0.0
    %92 = vmatpush1.msra.mxu0 0.0
    %93 = vmatprep.subr.mxu0 0.0
    %94 = vmatpush1.msra.mxu0 0.0
    %95 = vmatprep.subr.mxu0 0.0
    %96 = vmatpush1.msra.mxu0 0.0
    %97 = vmatprep.subr.mxu0 0.0
    %98 = vmatpush1.msra.mxu0 0.0
    %99 = vmatprep.subr.mxu0 0.0
    %100 = vmatpush1.msra.mxu0 0.0
    %101 = vmatprep.subr.mxu0 0.0
    %102 = vmatpush1.msra.mxu0 0.0
    %103 = vmatprep.subr.mxu0 0.0
    %104 = vmatpush1.msra.mxu0 0.0
    %105 = vmatprep.subr.mxu0 0.0
    %106 = vmatpush1.msra.mxu0 0.0
    %107 = vmatprep.subr.mxu0 0.0
    %108 = vmatpush1.msra.mxu0 0.0
    %109 = vmatprep.subr.mxu0 0.0
    %110 = vmatpush1.msra.mxu0 0.0
    %111 = vmatprep.subr.mxu0 0.0
    %112 = vmatpush1.msra.mxu0 0.0
    %113 = vmatprep.subr.mxu0 0.0
    %114 = vmatpush1.msra.mxu0 0.0
    %115 = vmatprep.subr.mxu0 0.0
    %116 = vmatpush1.msra.mxu0 %v43
    %117 = vmatprep.subr.mxu0 0.0
    %118 = vmatpush1.msra.mxu0 %v42
    %119 = vmatprep.subr.mxu0 0.0
    %120 = vmatpush2.msra.mxu0 0.0
    %121 = vmatprep.subr.mxu0 0.0
    %122 = vmatpush2.msra.mxu0 0.0
    %123 = vmatprep.subr.mxu0 0.0
    %124 = vmatpush2.msra.mxu0 0.0
    %125 = vmatprep.subr.mxu0 0.0
    %126 = vmatpush2.msra.mxu0 0.0
    %127 = vmatprep.subr.mxu0 0.0
    %128 = vmatpush2.msra.mxu0 0.0
    %129 = vmatprep.subr.mxu0 0.0
    %130 = vmatpush2.msra.mxu0 0.0
    %131 = vmatprep.subr.mxu0 0.0
    %132 = vmatpush2.msra.mxu0 0.0
    %133 = vmatprep.subr.mxu0 0.0
    %134 = vmatpush2.msra.mxu0 0.0
    %135 = vmatprep.subr.mxu0 0.0
    %136 = vmatpush2.msra.mxu0 0.0
    %137 = vmatprep.subr.mxu0 0.0
    %138 = vmatpush2.msra.mxu0 0.0
    %139 = vmatprep.subr.mxu0 0.0
    %140 = vmatpush2.msra.mxu0 0.0
    %141 = vmatprep.subr.mxu0 0.0
    %142 = vmatpush2.msra.mxu0 0.0
    %143 = vmatprep.subr.mxu0 0.0
    %144 = vmatpush2.msra.mxu0 0.0
    %145 = vmatprep.subr.mxu0 0.0
    %146 = vmatpush2.msra.mxu0 0.0
    %147 = vmatprep.subr.mxu0 0.0
    %148 = vmatpush2.msra.mxu0 0.0
    %149 = vmatprep.subr.mxu0 0.0
    %150 = vmatpush2.msra.mxu0 0.0
    %151 = vmatprep.mubr.f32.mxu0 0.0
    %152 = vmatmul.mubr.f32.gmra.mxu0 %v85
    %v153 = vpop.f32.mrf.mxu0
    %v154 = vadd.f32 %v82, %v153
    %v155 = vpop.f32.mrf.mxu0
    %156 = vdwg.mxu0
    %v157 = vmax.f32 %v154, 0.0
    %v158 = vlaneseq
    %v159 = vshrl.u32 %v158, 7
    %v160 = vsub.s32 0, %v159
    %v161 = vrot.slane %v77, %v160
    %162 = vmatprep.subr.mxu0 0.0
    %163 = vmatpush1.msra.mxu0 %v59
    %164 = vmatprep.subr.mxu0 0.0
    %165 = vmatpush1.msra.mxu0 %v58
    %166 = vmatprep.subr.mxu0 0.0
    %167 = vmatpush1.msra.mxu0 %v57
    %168 = vmatprep.subr.mxu0 0.0
    %169 = vmatpush1.msra.mxu0 %v56
    %170 = vmatprep.subr.mxu0 0.0
    %171 = vmatpush1.msra.mxu0 %v55
    %172 = vmatprep.subr.mxu0 0.0
    %173 = vmatpush1.msra.mxu0 %v54
    %174 = vmatprep.subr.mxu0 0.0
    %175 = vmatpush1.msra.mxu0 %v53
    %176 = vmatprep.subr.mxu0 0.0
    %177 = vmatpush1.msra.mxu0 %v52
    %178 = vmatprep.subr.mxu0 0.0
    %179 = vmatpush1.msra.mxu0 %v51
    %180 = vmatprep.subr.mxu0 0.0
    %181 = vmatpush1.msra.mxu0 %v50
    %182 = vmatprep.subr.mxu0 0.0
    %183 = vmatpush1.msra.mxu0 %v49
    %184 = vmatprep.subr.mxu0 0.0
    %185 = vmatpush1.msra.mxu0 %v48
    %186 = vmatprep.subr.mxu0 0.0
    %187 = vmatpush1.msra.mxu0 %v47
    %188 = vmatprep.subr.mxu0 0.0
    %189 = vmatpush1.msra.mxu0 %v46
    %190 = vmatprep.subr.mxu0 0.0
    %191 = vmatpush1.msra.mxu0 %v45
    %192 = vmatprep.subr.mxu0 0.0
    %193 = vmatpush1.msra.mxu0 %v44
    %194 = vmatprep.subr.mxu0 0.0
    %195 = vmatpush2.msra.mxu0 0.0
    %196 = vmatprep.subr.mxu0 0.0
    %197 = vmatpush2.msra.mxu0 0.0
    %198 = vmatprep.subr.mxu0 0.0
    %199 = vmatpush2.msra.mxu0 0.0
    %200 = vmatprep.subr.mxu0 0.0
    %201 = vmatpush2.msra.mxu0 0.0
    %202 = vmatprep.subr.mxu0 0.0
    %203 = vmatpush2.msra.mxu0 0.0
    %204 = vmatprep.subr.mxu0 0.0
    %205 = vmatpush2.msra.mxu0 0.0
    %206 = vmatprep.subr.mxu0 0.0
    %207 = vmatpush2.msra.mxu0 0.0
    %208 = vmatprep.subr.mxu0 0.0
    %209 = vmatpush2.msra.mxu0 0.0
    %210 = vmatprep.subr.mxu0 0.0
    %211 = vmatpush2.msra.mxu0 0.0
    %212 = vmatprep.subr.mxu0 0.0
    %213 = vmatpush2.msra.mxu0 0.0
    %214 = vmatprep.subr.mxu0 0.0
    %215 = vmatpush2.msra.mxu0 0.0
    %216 = vmatprep.subr.mxu0 0.0
    %217 = vmatpush2.msra.mxu0 0.0
    %218 = vmatprep.subr.mxu0 0.0
    %219 = vmatpush2.msra.mxu0 0.0
    %220 = vmatprep.subr.mxu0 0.0
    %221 = vmatpush2.msra.mxu0 0.0
    %222 = vmatprep.subr.mxu0 0.0
    %223 = vmatpush2.msra.mxu0 0.0
    %224 = vmatprep.subr.mxu0 0.0
    %225 = vmatpush2.msra.mxu0 0.0
    %226 = vmatprep.mubr.f32.mxu0 0.0
    %227 = vmatmul.mubr.f32.gmra.mxu0 %v157
    %v228 = vpop.f32.mrf.mxu0
    %v229 = vadd.f32 %v161, %v228
    %v230 = vpop.f32.mrf.mxu0
    %231 = vdwg.mxu0
    %v232 = vmax.f32 %v229, 0.0
    %v233 = vlaneseq
    %v234 = vshrl.u32 %v233, 7
    %v235 = vsub.s32 0, %v234
    %v236 = vrot.slane %v78, %v235
    %237 = vmatprep.subr.mxu0 0.0
    %238 = vmatpush1.msra.mxu0 %v75
    %239 = vmatprep.subr.mxu0 0.0
    %240 = vmatpush1.msra.mxu0 %v74
    %241 = vmatprep.subr.mxu0 0.0
    %242 = vmatpush1.msra.mxu0 %v73
    %243 = vmatprep.subr.mxu0 0.0
    %244 = vmatpush1.msra.mxu0 %v72
    %245 = vmatprep.subr.mxu0 0.0
    %246 = vmatpush1.msra.mxu0 %v71
    %247 = vmatprep.subr.mxu0 0.0
    %248 = vmatpush1.msra.mxu0 %v70
    %249 = vmatprep.subr.mxu0 0.0
    %250 = vmatpush1.msra.mxu0 %v69
    %251 = vmatprep.subr.mxu0 0.0
    %252 = vmatpush1.msra.mxu0 %v68
    %253 = vmatprep.subr.mxu0 0.0
    %254 = vmatpush1.msra.mxu0 %v67
    %255 = vmatprep.subr.mxu0 0.0
    %256 = vmatpush1.msra.mxu0 %v66
    %257 = vmatprep.subr.mxu0 0.0
    %258 = vmatpush1.msra.mxu0 %v65
    %259 = vmatprep.subr.mxu0 0.0
    %260 = vmatpush1.msra.mxu0 %v64
    %261 = vmatprep.subr.mxu0 0.0
    %262 = vmatpush1.msra.mxu0 %v63
    %263 = vmatprep.subr.mxu0 0.0
    %264 = vmatpush1.msra.mxu0 %v62
    %265 = vmatprep.subr.mxu0 0.0
    %266 = vmatpush1.msra.mxu0 %v61
    %267 = vmatprep.subr.mxu0 0.0
    %268 = vmatpush1.msra.mxu0 %v60
    %269 = vmatprep.subr.mxu0 0.0
    %270 = vmatpush2.msra.mxu0 0.0
    %271 = vmatprep.subr.mxu0 0.0
    %272 = vmatpush2.msra.mxu0 0.0
    %273 = vmatprep.subr.mxu0 0.0
    %274 = vmatpush2.msra.mxu0 0.0
    %275 = vmatprep.subr.mxu0 0.0
    %276 = vmatpush2.msra.mxu0 0.0
    %277 = vmatprep.subr.mxu0 0.0
    %278 = vmatpush2.msra.mxu0 0.0
    %279 = vmatprep.subr.mxu0 0.0
    %280 = vmatpush2.msra.mxu0 0.0
    %281 = vmatprep.subr.mxu0 0.0
    %282 = vmatpush2.msra.mxu0 0.0
    %283 = vmatprep.subr.mxu0 0.0
    %284 = vmatpush2.msra.mxu0 0.0
    %285 = vmatprep.subr.mxu0 0.0
    %286 = vmatpush2.msra.mxu0 0.0
    %287 = vmatprep.subr.mxu0 0.0
    %288 = vmatpush2.msra.mxu0 0.0
    %289 = vmatprep.subr.mxu0 0.0
    %290 = vmatpush2.msra.mxu0 0.0
    %291 = vmatprep.subr.mxu0 0.0
    %292 = vmatpush2.msra.mxu0 0.0
    %293 = vmatprep.subr.mxu0 0.0
    %294 = vmatpush2.msra.mxu0 0.0
    %295 = vmatprep.subr.mxu0 0.0
    %296 = vmatpush2.msra.mxu0 0.0
    %297 = vmatprep.subr.mxu0 0.0
    %298 = vmatpush2.msra.mxu0 0.0
    %299 = vmatprep.subr.mxu0 0.0
    %300 = vmatpush2.msra.mxu0 0.0
    %301 = vmatprep.mubr.f32.mxu0 0.0
    %302 = vmatmul.mubr.f32.gmra.mxu0 %v232
    %v303 = vpop.f32.mrf.mxu0
    %v304 = vadd.f32 %v236, %v303
    %v305 = vpop.f32.mrf.mxu0
    %306 = vdwg.mxu0
    %307 = vst [vmem:[#allocation7] sm:$0xff] %v304
    %v308 = vlaneseq
    %v309 = vand.u32 %v308, 127
    %vm310 = vcmp.lt.s32.totalorder %v309, 4
    %v311 = vsel %vm310, %v304, -inf
    %312 = vmax.xlane.f32.xlu0 %v311
    %v313 = vpop.xlane.xlu0 %312
    %vm314 = vcmp.eq.f32.partialorder %v311, %v313
    %v315 = vsel %vm314, %v309, 128
    %v316 = vand.u32 %v315, 65535
    %v317 = vshra.s32 %v315, 16
    %v318 = vcvt.s32.f32 %v316
    %v319 = vcvt.s32.f32 %v317
    %320 = vmin.xlane.f32.xlu0 %v319
    %v321 = vpop.xlane.xlu0 %320
    %vm322 = vcmp.eq.f32.partialorder %v319, %v321
    %v323 = vsel %vm322, %v318, inf
    %324 = vmin.xlane.f32.xlu0 %v323
    %v325 = vpop.xlane.xlu0 %324
    %v326 = vcvt.f32.s32 %v325
    %v327 = vcvt.f32.s32 %v321
    %v328 = vshll.u32 %v327, 16
    %v329 = vadd.s32 %v328, %v326
    %330 = vst [vmem:[#allocation8] sm:$0xff] %v329
    // Predicated region
    $region18: #{tpu_custom_call.1} parent=1 // pred_check
      _
    $region19: #{tpu_custom_call.1} parent=1 // pred_check_branch
      %332 = sbr.rel (0) target = $region21
    $region20: #{tpu_custom_call.1} parent=1 // pred_region
      %s334 = ssub.s32 128, 128
      %335 = vsyncadd [#allocation4], %s334
      %s337 = sshll.u32 [#allocation7], 4
      %s338 = int_to_ptr.vmem [resolvable:$true] %s337
      %340 = dma.vmem_to_hbm [thread:$0]  %s338, 128, %s2, [#allocation4]
    $region21: #{tpu_custom_call.1} parent=1 // pred_fallthru
      _
    // Predicated region
    $region22: #{tpu_custom_call.1} parent=1 // pred_check
      _
    $region23: #{tpu_custom_call.1} parent=1 // pred_check_branch
      %342 = sbr.rel (0) target = $region25
    $region24: #{tpu_custom_call.1} parent=1 // pred_region
      %s344 = ssub.s32 128, 128
      %345 = vsyncadd [#allocation9], %s344
      %s347 = sshll.u32 [#allocation8], 4
      %s348 = int_to_ptr.vmem [resolvable:$true] %s347
      %350 = dma.vmem_to_hbm [thread:$0]  %s348, 128, %s3, [#allocation9]
    $region25: #{tpu_custom_call.1} parent=1 // pred_fallthru
      _
    // Predicated region
    $region26: #{tpu_custom_call.1} parent=1 // pred_check
      _
    $region27: #{tpu_custom_call.1} parent=1 // pred_check_branch
      %352 = sbr.rel (0) target = $region29
    $region28: #{tpu_custom_call.1} parent=1 // pred_region
      %353 = dma.done [#allocation4], 128
    $region29: #{tpu_custom_call.1} parent=1 // pred_fallthru
      _
    // Predicated region
    $region30: #{tpu_custom_call.1} parent=1 // pred_check
      _
    $region31: #{tpu_custom_call.1} parent=1 // pred_check_branch
      %355 = sbr.rel (0) target = $region33
    $region32: #{tpu_custom_call.1} parent=1 // pred_region
      %356 = dma.done [#allocation9], 128
    $region33: #{tpu_custom_call.1} parent=1 // pred_fallthru
      _
    %357 = vsyncpa [#allocation3], 1
    %358 = vsyncpa [#allocation6], 1
    %359 = vsyncpa [#allocation4], 1
    %360 = vsyncpa [#allocation9], 1

</llo_original>
